<compile_context>
chip_gen: v7x
topology: tpu7x:2x2x1
jax: 0.10.0
libtpu: 0.0.40
codegen_flags: <defaults>
</compile_context>

<pallas_src>
import functools
import math

import jax
import jax.numpy as jnp
from jax.experimental import pallas as pl
from jax.experimental.pallas import tpu as pltpu

_LANE = 128


def _round_up(x, m):
    return ((x + m - 1) // m) * m


def _sublane_multiple(dtype):
    # Packed min-tile second-to-last dim: 8 (f32), 16 (bf16), 32 (int8/fp8).
    itemsize = jnp.dtype(dtype).itemsize
    return max(8, 32 // itemsize)


def _pick_tile(dim_pad, unit, requested):
    """Largest multiple of `unit` that divides `dim_pad` and is <= requested."""
    best = unit
    n_units = dim_pad // unit
    for d in range(1, n_units + 1):
        size = d * unit
        if size > requested:
            break
        if n_units % d == 0:
            best = size
    return best


def _vmem_limit_bytes():
    cap = 64 * 1024 * 1024  # conservative fallback = v7x per-TC VMEM
    try:
        info = pltpu.get_tpu_info()
        cap = int(getattr(info, "vmem_capacity_bytes", cap))
    except Exception:
        pass
    # ~72% of physical VMEM leaves headroom for Mosaic internal scratch and
    # the 2x double-buffering of each operand; never ask for more than 100 MiB.
    return min(int(cap * 0.72), 100 * 1024 * 1024)


# ----------------------------------------------------------------------------
# Kernels
# ----------------------------------------------------------------------------
def _linear_kernel_acc(x_ref, w_ref, b_ref, o_ref, acc_ref):
    # x_ref: (tm, tk)  w_ref: (tk, tn)  b_ref: (1, tn)
    # o_ref: (tm, tn)  acc_ref: (tm, tn) f32 scratch, K innermost "arbitrary".
    k = pl.program_id(2)

    @pl.when(k == 0)
    def _():
        acc_ref[...] = jnp.zeros_like(acc_ref)

    acc_ref[...] += jnp.dot(
        x_ref[...], w_ref[...], preferred_element_type=jnp.float32
    )

    @pl.when(k == pl.num_programs(2) - 1)
    def _():
        # Bias added once per output tile, in f32, before the output cast.
        o_ref[...] = (acc_ref[...] + b_ref[...]).astype(o_ref.dtype)


def _linear_kernel_single(x_ref, w_ref, b_ref, o_ref):
    # Single K step: no scratch, no zero/accumulate/copy overhead.
    o_ref[...] = (
        jnp.dot(x_ref[...], w_ref[...], preferred_element_type=jnp.float32)
        + b_ref[...]
    ).astype(o_ref.dtype)


# ----------------------------------------------------------------------------
# Parameter preparation (do once, outside the hot per-call path)
# ----------------------------------------------------------------------------
def prepare_linear_params(weight, bias=None, *, mxu_dtype=None):
    """Transpose + pad torch-layout weight (N, K) -> (K_pad, N_pad) once.

    Returns (weight_t_padded, bias_row_f32, out_features).
    """
    N, K = weight.shape
    w_t = weight.T  # (K, N)
    if mxu_dtype is not None:
        w_t = w_t.astype(jnp.dtype(mxu_dtype))
    K_pad = _round_up(K, _LANE)
    N_pad = _round_up(N, _LANE)
    if (K_pad, N_pad) != (K, N):
        w_t = jnp.zeros((K_pad, N_pad), w_t.dtype).at[:K, :N].set(w_t)
    b_row = jnp.zeros((1, N_pad), jnp.float32)
    if bias is not None:
        b_row = b_row.at[0, :N].set(bias.astype(jnp.float32))
    return w_t, b_row, N


# ----------------------------------------------------------------------------
# Pallas linear forward
# ----------------------------------------------------------------------------
@functools.partial(
    jax.jit, static_argnames=("out_features", "tm", "tn", "tk", "mxu_dtype")
)
def linear_pallas(
    x, weight_t, bias, *, out_features=None, tm=512, tn=1024, tk=1024, mxu_dtype=None
):
    """y = x @ weight_t + bias   (torch nn.Linear forward, Identity activation).

    x:        (..., K)
    weight_t: (K, N) or pre-padded (K_pad, N_pad) from `prepare_linear_params`
    bias:     (N,) vector, or pre-built (1, N_pad) float32 row, or None
    """
    *lead, K = x.shape
    out_dtype = x.dtype

    if mxu_dtype is not None:
        mxu_dt = jnp.dtype(mxu_dtype)
        x = x.astype(mxu_dt)
        weight_t = weight_t.astype(mxu_dt)

    Kw, Nw = weight_t.shape
    N = out_features if out_features is not None else Nw

    x2d = x.reshape(-1, K)
    M = x2d.shape[0]

    sub_m = _sublane_multiple(x2d.dtype)
    M_pad = _round_up(M, sub_m)
    K_pad = max(_round_up(K, _LANE), Kw)   # honour a pre-padded weight
    N_pad = max(_round_up(N, _LANE), Nw)

    # Pad only when needed (static shape checks -> zero-copy on aligned inputs).
    if (M_pad, K_pad) != (M, K):
        x2d = jnp.zeros((M_pad, K_pad), x2d.dtype).at[:M, :K].set(x2d)
    if (K_pad, N_pad) != (Kw, Nw):
        weight_t = jnp.zeros((K_pad, N_pad), weight_t.dtype).at[:Kw, :Nw].set(weight_t)
    if bias is None:
        b_row = jnp.zeros((1, N_pad), jnp.float32)
    elif bias.ndim == 1:
        b_row = jnp.zeros((1, N_pad), jnp.float32).at[0, :N].set(
            bias.astype(jnp.float32)
        )
    else:
        b_row = bias.astype(jnp.float32)
        if b_row.shape[1] != N_pad:
            b_row = (
                jnp.zeros((1, N_pad), jnp.float32)
                .at[:, : b_row.shape[1]]
                .set(b_row)
            )

    # Tiles: largest MXU-friendly divisors of the padded dims (never re-pad).
    tm = _pick_tile(M_pad, sub_m, min(tm, M_pad))
    tn = _pick_tile(N_pad, _LANE, min(tn, N_pad))
    tk = _pick_tile(K_pad, _LANE, min(tk, K_pad))

    # Keep >= 2 parallel output blocks so both v7x TensorCores get work.
    if (M_pad // tm) * (N_pad // tn) < 2:
        tm_small = _pick_tile(M_pad, sub_m, max(tm // 2, sub_m))
        tn_small = _pick_tile(N_pad, _LANE, max(tn // 2, _LANE))
        if tm_small < tm:
            tm = tm_small
        elif tn_small < tn:
            tn = tn_small

    m_blocks, n_blocks, k_blocks = M_pad // tm, N_pad // tn, K_pad // tk
    vmem_limit = _vmem_limit_bytes()
    out_shape = jax.ShapeDtypeStruct((M_pad, N_pad), out_dtype)

    if k_blocks == 1:
        out = pl.pallas_call(
            _linear_kernel_single,
            out_shape=out_shape,
            grid_spec=pltpu.PrefetchScalarGridSpec(
                num_scalar_prefetch=0,
                grid=(m_blocks, n_blocks),
                in_specs=[
                    pl.BlockSpec((tm, tk), lambda i, j: (i, 0)),   # x tile
                    pl.BlockSpec((tk, tn), lambda i, j: (0, j)),   # weight tile
                    pl.BlockSpec((1, tn), lambda i, j: (0, j)),    # bias tile
                ],
                out_specs=pl.BlockSpec((tm, tn), lambda i, j: (i, j)),
            ),
            compiler_params=pltpu.CompilerParams(
                dimension_semantics=("parallel", "parallel"),
                vmem_limit_bytes=vmem_limit,
            ),
        )(x2d, weight_t, b_row)
    else:
        out = pl.pallas_call(
            _linear_kernel_acc,
            out_shape=out_shape,
            grid_spec=pltpu.PrefetchScalarGridSpec(
                num_scalar_prefetch=0,
                grid=(m_blocks, n_blocks, k_blocks),
                in_specs=[
                    pl.BlockSpec((tm, tk), lambda i, j, k: (i, k)),   # x tile
                    pl.BlockSpec((tk, tn), lambda i, j, k: (k, j)),   # weight tile
                    pl.BlockSpec((1, tn), lambda i, j, k: (0, j)),    # bias tile
                ],
                out_specs=pl.BlockSpec((tm, tn), lambda i, j, k: (i, j)),
                scratch_shapes=[pltpu.VMEM((tm, tn), jnp.float32)],
            ),
            compiler_params=pltpu.CompilerParams(
                dimension_semantics=("parallel", "parallel", "arbitrary"),
                vmem_limit_bytes=vmem_limit,
            ),
        )(x2d, weight_t, b_row)

    if (M_pad, N_pad) != (M, N):
        out = out[:M, :N]
    return out.reshape(*lead, N)


def linear_forward(x, weight_t, bias, *, out_features=None,
                   small_problem_elems=1 << 18, **kwargs):
    """Dispatcher: tiny problems go straight to XLA (padding/launch overhead
    dominates there); real sizes use the Pallas kernel."""
    K = x.shape[-1]
    N = out_features if out_features is not None else weight_t.shape[1]
    M = math.prod(x.shape[:-1]) if x.ndim > 1 else 1
    if M * K * N < small_problem_elems:
        w = weight_t[:K, :N]
        b = 0.0 if bias is None else bias.reshape(-1)[:N]
        return (x @ w + b).astype(x.dtype)
    return linear_pallas(x, weight_t, bias, out_features=N, **kwargs)


def init_linear_params(key, input_size, output_size, std=0.1):
    """Mimics nn.init.trunc_normal_(weight, std=0.1) and zero bias."""
    # PyTorch trunc_normal_ default truncation is [-2, 2] (in std units).
    w = jax.random.truncated_normal(
        key, -2.0, 2.0, (output_size, input_size), dtype=jnp.float32
    ) * std
    b = jnp.zeros((output_size,), dtype=jnp.float32)
    return w, b


if __name__ == "__main__":
    # Small shapes consistent with the module: batch=2, seq=8, hidden=32 -> 32.
    batch, seq, input_size, output_size = 2, 8, 32, 32

    key = jax.random.PRNGKey(0)
    kx, kw, kx2, kw2 = jax.random.split(key, 4)

    x = jax.random.normal(kx, (batch, seq, input_size), dtype=jnp.float32)
    weight, bias = init_linear_params(kw, input_size, output_size)

    # Prepare (transpose + pad + cast) the parameters ONCE.
    w_t_p, b_row, n_out = prepare_linear_params(weight, bias)

    # --- single-K-step Pallas path --------------------------------------
    y = linear_pallas(x, w_t_p, b_row, out_features=n_out)
    y = jax.block_until_ready(y)
    y_ref = x @ weight.T + bias
    assert y.shape == (batch, seq, output_size)
    assert jnp.allclose(y, y_ref, atol=1e-4, rtol=1e-4)

    # --- multi-K-step (accumulator) Pallas path --------------------------
    input_size2 = 256
    x2 = jax.random.normal(kx2, (batch, seq, input_size2), dtype=jnp.float32)
    weight2, bias2 = init_linear_params(kw2, input_size2, output_size)
    w_t2_p, b_row2, n_out2 = prepare_linear_params(weight2, bias2)
    y2 = linear_pallas(x2, w_t2_p, b_row2, out_features=n_out2, tk=128)
    y2 = jax.block_until_ready(y2)
    y2_ref = x2 @ weight2.T + bias2
    assert y2.shape == (batch, seq, output_size)
    assert jnp.allclose(y2, y2_ref, atol=1e-4, rtol=1e-4)

    print("KERNEL_OK")
</pallas_src>

<mosaic_0001>
module attributes {stable_mosaic.version = 11 : i64} {
  func.func @_linear_kernel_single(%arg0: i32, %arg1: i32, %arg2: memref<8x128xf32, #tpu.memory_space<vmem>>, %arg3: memref<128x128xf32, #tpu.memory_space<vmem>>, %arg4: memref<1x128xf32, #tpu.memory_space<vmem>>, %arg5: memref<8x128xf32, #tpu.memory_space<vmem>>) attributes {dimension_semantics = [#tpu.dimension_semantics<parallel>, #tpu.dimension_semantics<parallel>], iteration_bounds = array<i64: 2, 1>, scalar_prefetch = 0 : i64, scratch_operands = 0 : i64, tpu.core_type = #tpu.core_type<tc>, window_params = [{transform_indices = @transform_0, window_bounds = array<i64: 8, 128>}, {transform_indices = @transform_1, window_bounds = array<i64: 128, 128>}, {transform_indices = @transform_2, window_bounds = array<i64: 1, 128>}, {transform_indices = @transform_3, window_bounds = array<i64: 8, 128>}]} {
    %c0 = arith.constant 0 : index
    %c0_0 = arith.constant 0 : index
    %0 = vector.load %arg2[%c0, %c0_0] : memref<8x128xf32, #tpu.memory_space<vmem>>, vector<8x128xf32>
    %c0_1 = arith.constant 0 : index
    %c0_2 = arith.constant 0 : index
    %1 = vector.load %arg3[%c0_1, %c0_2] : memref<128x128xf32, #tpu.memory_space<vmem>>, vector<128x128xf32>
    %cst = arith.constant dense<0.000000e+00> : vector<8x128xf32>
    %2 = tpu.matmul %0, %1, %cst {dimension_numbers = #tpu.dot_dimension_numbers<[1], [0], [0], [1], [0, 0, 1, 1], [], []>} : vector<8x128xf32>, vector<128x128xf32>, vector<8x128xf32> -> vector<8x128xf32>
    %c0_3 = arith.constant 0 : index
    %c0_4 = arith.constant 0 : index
    %3 = vector.load %arg4[%c0_3, %c0_4] : memref<1x128xf32, #tpu.memory_space<vmem>>, vector<1x128xf32>
    %4 = vector.broadcast %3 : vector<1x128xf32> to vector<8x128xf32>
    %5 = arith.addf %2, %4 : vector<8x128xf32>
    %c0_5 = arith.constant 0 : index
    %c0_6 = arith.constant 0 : index
    %6 = vector.load %arg5[%c0_5, %c0_6] : memref<8x128xf32, #tpu.memory_space<vmem>>, vector<8x128xf32>
    tpu.vector_store %arg5[%c0_5, %c0_6], %5 {strides = array<i32>} : memref<8x128xf32, #tpu.memory_space<vmem>>, vector<8x128xf32>,
    return
  }
  func.func @transform_0(%arg0: i32, %arg1: i32) -> (i32, i32) {
    %c0_i32 = arith.constant 0 : i32
    %c0_i32_0 = arith.constant 0 : i32
    return %arg0, %c0_i32 : i32, i32
  }
  func.func @transform_1(%arg0: i32, %arg1: i32) -> (i32, i32) {
    %c0_i32 = arith.constant 0 : i32
    %c0_i32_0 = arith.constant 0 : i32
    return %c0_i32, %arg1 : i32, i32
  }
  func.func @transform_2(%arg0: i32, %arg1: i32) -> (i32, i32) {
    %c0_i32 = arith.constant 0 : i32
    %c0_i32_0 = arith.constant 0 : i32
    return %c0_i32, %arg1 : i32, i32
  }
  func.func @transform_3(%arg0: i32, %arg1: i32) -> (i32, i32) {
    %c0_i32 = arith.constant 0 : i32
    return %arg0, %arg1 : i32, i32
  }
}

</mosaic_0001>

<llo_original>
// kernel: linear_pallas.1
$region0: #{linear_pallas.1}
  #allocation0 [shape = 'u32[]', space=smem, size = 0x4, offset = 0x4, fixed_abs, tag = 'smem constant byte address 0x4 - core index']
  #allocation1 [shape = 'u32[144,128]{1,0:T(1,128)}', space=vmem, size = 0x12000, scoped, tag = 'internal scratch']
  %s0 = inlined_call_operand.vmem [shape: f32[16,128], index: 0, kind: input, shape index: {}]
  %s1 = inlined_call_operand.hbm [shape: f32[128,128], index: 1, kind: input, shape index: {}]
  %s2 = inlined_call_operand.vmem [shape: f32[1,128], index: 2, kind: input, shape index: {}]
  %s3 = inlined_call_operand.vmem [shape: f32[16,128], index: 3, kind: output, shape index: {}]
  %s4 = sld [smem:[#allocation0]]
  $region49: #{linear_pallas.1} parent=0
    _
  %s6 = ssub.s32 1, %s4
  %s7 = scalar_select 0, %s6, %s4
  $region1: #{linear_pallas.1} parent=0
    #allocation2 [shape = 'u8[65536]{0}', space=vmem, size = 0x10000, scoped, tag = 'input window, operand 1, single buffered']
    #allocation3 [shape = 's32[2]{0}', space=sflag, size = 0x8, scoped, tag = 'scoped memory for linear_pallas.1']
    %8 = vsyncpa [#allocation3], 0
    loop: start=0, step=1, limit=4
    $region2: #{linear_pallas.1} parent=1 // loop_pre_header
      _
    $region3: #{linear_pallas.1} parent=1 // loop_header
      %s10 = sphi 0, %s14
      %p11 = scmp.ge.s32.totalorder %s10, 4
      %s17 = sphi 0, %s29
      %s18 = sphi 0, %s25
      %s19 = sphi 0, %s17
      %s20 = sphi 0, %s18
      %s21 = sphi 0, %s19
      %s22 = sphi 0, %s20
      %s32 = sphi 0, %s34
      %s35 = sphi 0, %s32
      %s36 = sphi 0, %s35
      %s52 = sphi 0, %s36
      %s58 = sphi 0, %s60
      %s61 = sphi 0, %s58
      %s62 = sphi 0, %s61
      %s78 = sphi 0, %s62
      %s84 = sphi 0, %s86
      %s87 = sphi 0, %s84
      %s88 = sphi 0, %s87
      %s104 = sphi 0, %s88
      %s112 = sphi 0, %s114
      %s115 = sphi 0, %s112
      %s116 = sphi 0, %s115
      %s132 = sphi 0, %s116
    $region4: #{linear_pallas.1} parent=1 // loop_header_branch
      %13 = sbr.rel (%p11) target = $region8
    $region5: #{linear_pallas.1} parent=1 // loop_body
      %s15 = ssub.s32 %s10, 1
      %s16 = ssub.s32 %s10, 2
      %s23 = sadd.s32 1, %s18
      %p24 = scmp.ge.s32.totalorder %s23, 1
      %s25 = scalar_select %p24, 0, %s23
      %s26 = sadd.s32 1, %s17
      %s27 = scalar_select %p24, %s26, %s17
      %p28 = scmp.ge.s32.totalorder %s27, 2
      %s29 = scalar_select %p28, 0, %s27
      %s30 = ssub.s32 %s17, %s29
      %p31 = scmp.eq.s32.totalorder %s30, 0
      %s33 = sadd.s32 %s32, 1
      %s34 = scalar_select %p31, %s32, %s33
      %p37 = pneg %p31
      %p38 = scmp.eq.s32.totalorder %s10, 1
      %p39 = por %p37, %p38
      %p40 = scmp.ne.s32.totalorder %s32, %s35
      %p41 = scmp.eq.s32.totalorder %s10, 0
      %p42 = por %p40, %p41
      %p43 = scmp.ne.s32.totalorder %s32, %s35
      %p44 = scmp.eq.s32.totalorder %s15, 1
      %p45 = por %p43, %p44
      %p46 = scmp.ne.s32.totalorder %s35, %s36
      %p47 = scmp.eq.s32.totalorder %s15, 0
      %p48 = por %p46, %p47
      %p49 = scmp.ne.s32.totalorder %s35, %s36
      %p50 = scmp.eq.s32.totalorder %s16, 1
      %p51 = por %p49, %p50
      %p53 = scmp.ne.s32.totalorder %s36, %s52
      %p54 = scmp.eq.s32.totalorder %s16, 0
      %p55 = por %p53, %p54
      %s56 = ssub.s32 %s18, %s25
      %p57 = scmp.eq.s32.totalorder %s56, 0
      %s59 = sadd.s32 %s58, 1
      %s60 = scalar_select %p57, %s58, %s59
      %p63 = pneg %p57
      %p64 = scmp.eq.s32.totalorder %s10, 1
      %p65 = por %p63, %p64
      %p66 = scmp.ne.s32.totalorder %s58, %s61
      %p67 = scmp.eq.s32.totalorder %s10, 0
      %p68 = por %p66, %p67
      %p69 = scmp.ne.s32.totalorder %s58, %s61
      %p70 = scmp.eq.s32.totalorder %s15, 1
      %p71 = por %p69, %p70
      %p72 = scmp.ne.s32.totalorder %s61, %s62
      %p73 = scmp.eq.s32.totalorder %s15, 0
      %p74 = por %p72, %p73
      %p75 = scmp.ne.s32.totalorder %s61, %s62
      %p76 = scmp.eq.s32.totalorder %s16, 1
      %p77 = por %p75, %p76
      %p79 = scmp.ne.s32.totalorder %s62, %s78
      %p80 = scmp.eq.s32.totalorder %s16, 0
      %p81 = por %p79, %p80
      %s82 = ssub.s32 %s18, %s25
      %p83 = scmp.eq.s32.totalorder %s82, 0
      %s85 = sadd.s32 %s84, 1
      %s86 = scalar_select %p83, %s84, %s85
      %p89 = pneg %p83
      %p90 = scmp.eq.s32.totalorder %s10, 1
      %p91 = por %p89, %p90
      %p92 = scmp.ne.s32.totalorder %s84, %s87
      %p93 = scmp.eq.s32.totalorder %s10, 0
      %p94 = por %p92, %p93
      %p95 = scmp.ne.s32.totalorder %s84, %s87
      %p96 = scmp.eq.s32.totalorder %s15, 1
      %p97 = por %p95, %p96
      %p98 = scmp.ne.s32.totalorder %s87, %s88
      %p99 = scmp.eq.s32.totalorder %s15, 0
      %p100 = por %p98, %p99
      %p101 = scmp.ne.s32.totalorder %s87, %s88
      %p102 = scmp.eq.s32.totalorder %s16, 1
      %p103 = por %p101, %p102
      %p105 = scmp.ne.s32.totalorder %s88, %s104
      %p106 = scmp.eq.s32.totalorder %s16, 0
      %p107 = por %p105, %p106
      %s108 = ssub.s32 %s17, %s29
      %s109 = ssub.s32 %s18, %s25
      %s110 = sor.u32 %s108, %s109
      %p111 = scmp.eq.s32.totalorder %s110, 0
      %s113 = sadd.s32 %s112, 1
      %s114 = scalar_select %p111, %s112, %s113
      %p117 = pneg %p111
      %p118 = scmp.eq.s32.totalorder %s10, 1
      %p119 = por %p117, %p118
      %p120 = scmp.ne.s32.totalorder %s112, %s115
      %p121 = scmp.eq.s32.totalorder %s10, 0
      %p122 = por %p120, %p121
      %p123 = scmp.ne.s32.totalorder %s112, %s115
      %p124 = scmp.eq.s32.totalorder %s15, 1
      %p125 = por %p123, %p124
      %p126 = scmp.ne.s32.totalorder %s115, %s116
      %p127 = scmp.eq.s32.totalorder %s15, 0
      %p128 = por %p126, %p127
      %p129 = scmp.ne.s32.totalorder %s115, %s116
      %p130 = scmp.eq.s32.totalorder %s16, 1
      %p131 = por %p129, %p130
      %p133 = scmp.ne.s32.totalorder %s116, %s132
      %p134 = scmp.eq.s32.totalorder %s16, 0
      %p135 = por %p133, %p134
      %p136 = scmp.le.s32.totalorder 1, %s10
      %p137 = scmp.lt.s32.totalorder %s10, 3
      %p138 = pnand %p136, %p137
      %p139 = pneg %p138
      // Predicated region
      $region9: #{linear_pallas.1} parent=5 // pred_check
        _
      $region10: #{linear_pallas.1} parent=5 // pred_check_branch
        %141 = sbr.rel (%p138) target = $region12
      $region11: #{linear_pallas.1} parent=5 // pred_region
        %s142 = ssub.s32 %s10, 1
        // Predicated region
        $region13: #{linear_pallas.1} parent=11 // pred_check
          %p143 = pneg %p74
        $region14: #{linear_pallas.1} parent=11 // pred_check_branch
          %145 = sbr.rel (%p143) target = $region16
        $region15: #{linear_pallas.1} parent=11 // pred_region
          %s147 = ssub.s32 2048, 2048
          %148 = vsyncadd [#allocation3], %s147
          %s149 = smul.addr %s20, 128
          %s150 = scalar_lea.hbm %s1, %s149
          %s151 = sshll.u32 [#allocation2], 4
          %s152 = int_to_ptr.vmem [resolvable:$true] %s151
          %157 = dma.hbm_to_vmem [thread:$0]  %s150, 2048, %s152, [#allocation3], 128, 128, 8
        $region16: #{linear_pallas.1} parent=11 // pred_fallthru
          _
        // Predicated region
        $region17: #{linear_pallas.1} parent=11 // pred_check
          %p158 = pneg %p100
        $region18: #{linear_pallas.1} parent=11 // pred_check_branch
          %160 = sbr.rel (%p158) target = $region20
        $region19: #{linear_pallas.1} parent=11 // pred_region
          %p161 = scmp.lt.s32.totalorder %s20, 0
          %s162 = scalar_select %p161, %s20, 0
          %s163 = scalar_lea.vmem %s2, %s162
        $region20: #{linear_pallas.1} parent=11 // pred_fallthru
          _
      $region12: #{linear_pallas.1} parent=5 // pred_fallthru
        _
      %p164 = scmp.lt.s32.totalorder %s10, 2
      // Predicated region
      $region21: #{linear_pallas.1} parent=5 // pred_check
        %p165 = pneg %p164
      $region22: #{linear_pallas.1} parent=5 // pred_check_branch
        %167 = sbr.rel (%p165) target = $region24
      $region23: #{linear_pallas.1} parent=5 // pred_region
        // Predicated region
        $region25: #{linear_pallas.1} parent=23 // pred_check
          %p168 = pneg %p42
        $region26: #{linear_pallas.1} parent=23 // pred_check_branch
          %170 = sbr.rel (%p168) target = $region28
        $region27: #{linear_pallas.1} parent=23 // pred_region
          %p171 = scmp.lt.s32.totalorder %s17, 1
          %s172 = scalar_select %p171, %s17, 1
          %s173 = smul.addr %s172, 8
          %s174 = scalar_lea.vmem %s0, %s173
        $region28: #{linear_pallas.1} parent=23 // pred_fallthru
          _
      $region24: #{linear_pallas.1} parent=5 // pred_fallthru
        _
      %p175 = scmp.le.s32.totalorder 1, %s10
      %p176 = scmp.lt.s32.totalorder %s10, 3
      %p177 = pnand %p175, %p176
      %p178 = pneg %p177
      // Predicated region
      $region29: #{linear_pallas.1} parent=5 // pred_check
        _
      $region30: #{linear_pallas.1} parent=5 // pred_check_branch
        %180 = sbr.rel (%p177) target = $region32
      $region31: #{linear_pallas.1} parent=5 // pred_region
        %s181 = ssub.s32 %s10, 1
        // Predicated region
        $region33: #{linear_pallas.1} parent=31 // pred_check
          %p182 = pneg %p74
        $region34: #{linear_pallas.1} parent=31 // pred_check_branch
          %184 = sbr.rel (%p182) target = $region36
        $region35: #{linear_pallas.1} parent=31 // pred_region
          %185 = dma.done [#allocation3], 2048
        $region36: #{linear_pallas.1} parent=31 // pred_fallthru
          _
        %p186 = scmp.lt.s32.totalorder %s19, 1
        %s187 = scalar_select %p186, %s19, 1
        %s188 = smul.addr %s187, 8
        %s189 = scalar_lea.vmem %s0, %s188
        %p190 = pneg %p48
        %p191 = pneg %p45
        %p192 = pneg %p74
        %p193 = pneg %p71
        %p194 = scmp.lt.s32.totalorder %s20, 0
        %s195 = scalar_select %p194, %s20, 0
        %s196 = scalar_lea.vmem %s2, %s195
        %p197 = pneg %p100
        %p198 = pneg %p97
        %p199 = pneg %p128
        %p200 = pneg %p125
        %p201 = scmp.lt.s32.totalorder %s19, 1
        %s202 = scalar_select %p201, %s19, 1
        %p203 = scmp.lt.s32.totalorder %s20, 0
        %s204 = scalar_select %p203, %s20, 0
        %s205 = sadd.s32 %s204, %s202
        %s206 = smul.addr %s205, 8
        %s207 = scalar_lea.vmem %s3, %s206
        %p208 = scmp.lt.s32.totalorder %s19, 1
        %s209 = scalar_select %p208, %s19, 1
        %s210 = smul.addr %s209, 8
        %s211 = scalar_lea.vmem %s0, %s210
        %p212 = scmp.lt.s32.totalorder %s20, 0
        %s213 = scalar_select %p212, %s20, 0
        %s214 = scalar_lea.vmem %s2, %s213
        %p215 = scmp.lt.s32.totalorder %s19, 1
        %s216 = scalar_select %p215, %s19, 1
        %p217 = scmp.lt.s32.totalorder %s20, 0
        %s218 = scalar_select %p217, %s20, 0
        %s219 = sadd.s32 %s218, %s216
        %s220 = smul.addr %s219, 8
        %s221 = scalar_lea.vmem %s3, %s220
        %v222 = vld [vmem:[%s211] sm:$0xff]
        %v223 = vld [vmem:[#allocation2] sm:$0xff]
        %v224 = vld [vmem:[#allocation2 + $0x8] sm:$0xff]
        %v225 = vld [vmem:[#allocation2 + $0x10] sm:$0xff]
        %v226 = vld [vmem:[#allocation2 + $0x18] sm:$0xff]
        %v227 = vld [vmem:[#allocation2 + $0x20] sm:$0xff]
        %v228 = vld [vmem:[#allocation2 + $0x28] sm:$0xff]
        %v229 = vld [vmem:[#allocation2 + $0x30] sm:$0xff]
        %v230 = vld [vmem:[#allocation2 + $0x38] sm:$0xff]
        %v231 = vld [vmem:[#allocation2 + $0x40] sm:$0xff]
        %v232 = vld [vmem:[#allocation2 + $0x48] sm:$0xff]
        %v233 = vld [vmem:[#allocation2 + $0x50] sm:$0xff]
        %v234 = vld [vmem:[#allocation2 + $0x58] sm:$0xff]
        %v235 = vld [vmem:[#allocation2 + $0x60] sm:$0xff]
        %v236 = vld [vmem:[#allocation2 + $0x68] sm:$0xff]
        %v237 = vld [vmem:[#allocation2 + $0x70] sm:$0xff]
        %v238 = vld [vmem:[#allocation2 + $0x78] sm:$0xff]
        %v239 = vld [vmem:[%s214] sm:$0x1]
        %v241 = vlaneseq
        %v242 = vshrl.u32 %v241, 7
        %v243 = vsub.s32 0, %v242
        %v244 = vrot.slane %v239, %v243
        %246 = vmatprep.subr.mxu0 0.0
        %247 = vmatpush1.msra.mxu0 %v223
        %248 = vmatprep.subr.mxu0 0.0
        %249 = vmatpush1.msra.mxu0 %v224
        %250 = vmatprep.subr.mxu0 0.0
        %251 = vmatpush1.msra.mxu0 %v225
        %252 = vmatprep.subr.mxu0 0.0
        %253 = vmatpush1.msra.mxu0 %v226
        %254 = vmatprep.subr.mxu0 0.0
        %255 = vmatpush1.msra.mxu0 %v227
        %256 = vmatprep.subr.mxu0 0.0
        %257 = vmatpush1.msra.mxu0 %v228
        %258 = vmatprep.subr.mxu0 0.0
        %259 = vmatpush1.msra.mxu0 %v229
        %260 = vmatprep.subr.mxu0 0.0
        %261 = vmatpush1.msra.mxu0 %v230
        %262 = vmatprep.subr.mxu0 0.0
        %263 = vmatpush1.msra.mxu0 %v231
        %264 = vmatprep.subr.mxu0 0.0
        %265 = vmatpush1.msra.mxu0 %v232
        %266 = vmatprep.subr.mxu0 0.0
        %267 = vmatpush1.msra.mxu0 %v233
        %268 = vmatprep.subr.mxu0 0.0
        %269 = vmatpush1.msra.mxu0 %v234
        %270 = vmatprep.subr.mxu0 0.0
        %271 = vmatpush1.msra.mxu0 %v235
        %272 = vmatprep.subr.mxu0 0.0
        %273 = vmatpush1.msra.mxu0 %v236
        %274 = vmatprep.subr.mxu0 0.0
        %275 = vmatpush1.msra.mxu0 %v237
        %276 = vmatprep.subr.mxu0 0.0
        %277 = vmatpush1.msra.mxu0 %v238
        %278 = vmatprep.subr.mxu0 0.0
        %279 = vmatpush1.msra.mxu0 0.0
        %280 = vmatprep.subr.mxu0 0.0
        %281 = vmatpush1.msra.mxu0 0.0
        %282 = vmatprep.subr.mxu0 0.0
        %283 = vmatpush1.msra.mxu0 0.0
        %284 = vmatprep.subr.mxu0 0.0
        %285 = vmatpush1.msra.mxu0 0.0
        %286 = vmatprep.subr.mxu0 0.0
        %287 = vmatpush1.msra.mxu0 0.0
        %288 = vmatprep.subr.mxu0 0.0
        %289 = vmatpush1.msra.mxu0 0.0
        %290 = vmatprep.subr.mxu0 0.0
        %291 = vmatpush1.msra.mxu0 0.0
        %292 = vmatprep.subr.mxu0 0.0
        %293 = vmatpush1.msra.mxu0 0.0
        %294 = vmatprep.subr.mxu0 0.0
        %295 = vmatpush1.msra.mxu0 0.0
        %296 = vmatprep.subr.mxu0 0.0
        %297 = vmatpush1.msra.mxu0 0.0
        %298 = vmatprep.subr.mxu0 0.0
        %299 = vmatpush1.msra.mxu0 0.0
        %300 = vmatprep.subr.mxu0 0.0
        %301 = vmatpush1.msra.mxu0 0.0
        %302 = vmatprep.subr.mxu0 0.0
        %303 = vmatpush1.msra.mxu0 0.0
        %304 = vmatprep.subr.mxu0 0.0
        %305 = vmatpush1.msra.mxu0 0.0
        %306 = vmatprep.subr.mxu0 0.0
        %307 = vmatpush1.msra.mxu0 0.0
        %308 = vmatprep.subr.mxu0 0.0
        %309 = vmatpush1.msra.mxu0 0.0
        %310 = vmatprep.mubr.f32.mxu0 0.0
        %311 = vmatmul.mubr.f32.gmra.mrb[0].mxu0 %v222
        %v312 = vpop.f32.mrb[0].mxu0
        %v313 = vadd.f32 %v244, %v312
        %v314 = vpop.f32.mrb[0].mxu0
        %315 = vdwg.mxu0
        %316 = vst [vmem:[%s221] sm:$0xff] %v313
        %p317 = scmp.lt.s32.totalorder %s19, 1
        %s318 = scalar_select %p317, %s19, 1
        %p319 = scmp.lt.s32.totalorder %s20, 0
        %s320 = scalar_select %p319, %s20, 0
        %s321 = sadd.s32 %s320, %s318
        %s322 = smul.addr %s321, 8
        %s323 = scalar_lea.vmem %s3, %s322
        // Predicated region
        $region37: #{linear_pallas.1} parent=31 // pred_check
          %p324 = pneg %p125
        $region38: #{linear_pallas.1} parent=31 // pred_check_branch
          %326 = sbr.rel (%p324) target = $region40
        $region39: #{linear_pallas.1} parent=31 // pred_region
          _
        $region40: #{linear_pallas.1} parent=31 // pred_fallthru
          _
      $region32: #{linear_pallas.1} parent=5 // pred_fallthru
        _
      %p327 = scmp.le.s32.totalorder 2, %s10
      // Predicated region
      $region41: #{linear_pallas.1} parent=5 // pred_check
        %p328 = pneg %p327
      $region42: #{linear_pallas.1} parent=5 // pred_check_branch
        %330 = sbr.rel (%p328) target = $region44
      $region43: #{linear_pallas.1} parent=5 // pred_region
        %s331 = ssub.s32 %s10, 2
        // Predicated region
        $region45: #{linear_pallas.1} parent=43 // pred_check
          %p332 = pneg %p131
        $region46: #{linear_pallas.1} parent=43 // pred_check_branch
          %334 = sbr.rel (%p332) target = $region48
        $region47: #{linear_pallas.1} parent=43 // pred_region
          %p335 = scmp.lt.s32.totalorder %s21, 1
          %s336 = scalar_select %p335, %s21, 1
          %p337 = scmp.lt.s32.totalorder %s22, 0
          %s338 = scalar_select %p337, %s22, 0
          %s339 = sadd.s32 %s338, %s336
          %s340 = smul.addr %s339, 8
          %s341 = scalar_lea.vmem %s3, %s340
        $region48: #{linear_pallas.1} parent=43 // pred_fallthru
          _
      $region44: #{linear_pallas.1} parent=5 // pred_fallthru
        _
    $region6: #{linear_pallas.1} parent=1 // loop_footer
      %s14 = sadd.s32 1, %s10
    $region7: #{linear_pallas.1} parent=1 // loop_footer_branch
      %9 = sbr.rel target = $region3
    $region8: #{linear_pallas.1} parent=1 // loop_exit
      _
    %342 = vsyncpa [#allocation3], 1
    %s343 = scalar_lea.sflag [#allocation3], 1
    %344 = vsyncpa %s343, 1

</llo_original>
